<compile_context>
chip_gen: v5e
topology: v5e:2x2
jax: 0.10.0
libtpu: 0.0.40
codegen_flags: <defaults>
</compile_context>

<pallas_src>
import numpy as np

import jax
import jax.numpy as jnp
from jax.experimental import pallas as pl
from jax.experimental.pallas import tpu as pltpu


def _pick_hw_tile(hw):
    """Largest lane-aligned tile (multiple of 128, <= 512) dividing H*W."""
    for t in (512, 256, 128):
        if hw % t == 0:
            return t
    return hw  # small / odd feature maps: one (possibly lane-masked) tile


# ---------------------------------------------------------------------------
# Phase 1: conv tile as a single MXU matmul (K = 9*Cin) + per-tile BN stats.
# ---------------------------------------------------------------------------
def _conv_stats_kernel(p_ref, w_ref, conv_ref, mean_ref, m2_ref):
    # p_ref    : (1, 9*Cin, HW_T) bf16   im2col patches (lane axis = H*W)
    # w_ref    : (Cout, 9*Cin)    bf16   flattened conv weights (grid-constant)
    # conv_ref : (1, Cout, HW_T)  bf16   conv output tile, channels-first
    # mean_ref : (1, Cout, 1)     f32    per-tile per-channel mean
    # m2_ref   : (1, Cout, 1)     f32    per-tile per-channel sum((x-mean)^2)
    acc = jnp.dot(w_ref[...], p_ref[0],
                  preferred_element_type=jnp.float32)        # (Cout, HW_T) f32
    hw_t = acc.shape[-1]
    m = jnp.sum(acc, axis=1, keepdims=True) * (1.0 / hw_t)   # (Cout, 1)
    c = acc - m
    m2 = jnp.sum(c * c, axis=1, keepdims=True)               # (Cout, 1)
    conv_ref[0] = acc.astype(conv_ref.dtype)
    mean_ref[0] = m
    m2_ref[0] = m2


# ---------------------------------------------------------------------------
# Phase 2: y = conv * scale + shift (+ residual) ; ReLU.  Output is NCHW.
# scale/shift already contain rsqrt(var+eps), gamma, beta, mean and the d gate.
# ---------------------------------------------------------------------------
def _bn_relu_kernel(conv_ref, scale_ref, shift_ref, o_ref):
    y = conv_ref[0].astype(jnp.float32) * scale_ref[...] + shift_ref[...]
    o_ref[0] = jnp.maximum(y, 0.0)


def _bn_res_relu_kernel(conv_ref, scale_ref, shift_ref, res_ref, o_ref):
    y = (conv_ref[0].astype(jnp.float32) * scale_ref[...] + shift_ref[...]
         + res_ref[0])
    o_ref[0] = jnp.maximum(y, 0.0)


def ds_vgg_block(x_nchw, params, downsample=None, d_is_zero=None):
    """Forward pass of dsVGGBlock.  x_nchw: (N, Cin, H, W) f32 -> (N, Cout, H, W)."""
    N, Cin, H, W = x_nchw.shape
    w_oihw = params["conv_w"]                       # (Cout, Cin, 3, 3)
    Cout = w_oihw.shape[0]
    HW = H * W
    K9 = 9 * Cin
    HW_T = _pick_hw_tile(HW)
    n_t = HW // HW_T

    if d_is_zero is None:
        # Static branch mirroring `if self.d.data[0] == 0:` in PyTorch.  Pass
        # d_is_zero explicitly when tracing this wrapper under jax.jit.
        d_is_zero = bool(np.asarray(jax.device_get(params["d"]))[0] == 0.0)

    # --- im2col in channels-first layout: (N, 9*Cin, H*W) bf16 --------------
    # Built directly from NCHW (no NHWC transpose anywhere); each tap is a
    # shifted window of the zero-padded input, so H*W tiling needs no halo.
    x_pad = jnp.pad(x_nchw.astype(jnp.bfloat16),
                    ((0, 0), (0, 0), (1, 1), (1, 1)))
    taps = [x_pad[:, :, kh:kh + H, kw:kw + W]
            for kh in range(3) for kw in range(3)]           # 9 x (N,Cin,H,W)
    patches = jnp.stack(taps, axis=1).reshape(N, K9, HW)     # (N, 9*Cin, H*W)

    # OIHW -> (Cout, tap, Cin) -> (Cout, 9*Cin), matching the patch k-order
    # k = (kh*3 + kw)*Cin + cin.  Conv bias is dropped: it is exactly
    # cancelled by the BN mean subtraction below.
    w_mat = jnp.transpose(w_oihw, (0, 2, 3, 1)).reshape(Cout, K9)
    w_mat = w_mat.astype(jnp.bfloat16)

    compiler_params = pltpu.CompilerParams(
        dimension_semantics=("parallel", "parallel"),    # megacore-shardable
        vmem_limit_bytes=32 * 1024 * 1024,               # fits v5e/v6e/v7x
    )

    conv_bytes = N * Cout * HW * 2                       # bf16 intermediate
    cost1 = pl.CostEstimate(
        flops=2 * N * HW * K9 * Cout,
        transcendentals=0,
        bytes_accessed=(patches.size * 2 + w_mat.size * 2 + conv_bytes
                        + 2 * N * n_t * Cout * 4),
    )

    # ----- Phase 1: conv + per-tile stats, grid over (image, H*W tile) ------
    # NOTE: the weight block's index_map is constant across the grid; Pallas'
    # revisit logic keeps it resident rather than re-fetching it each step.
    conv, mean_t, m2_t = pl.pallas_call(
        _conv_stats_kernel,
        grid=(N, n_t),
        in_specs=[
            pl.BlockSpec((1, K9, HW_T), lambda n, t: (n, 0, t)),
            pl.BlockSpec((Cout, K9), lambda n, t: (0, 0)),
        ],
        out_specs=(
            pl.BlockSpec((1, Cout, HW_T), lambda n, t: (n, 0, t)),
            pl.BlockSpec((1, Cout, 1), lambda n, t: (n * n_t + t, 0, 0)),
            pl.BlockSpec((1, Cout, 1), lambda n, t: (n * n_t + t, 0, 0)),
        ),
        out_shape=(
            jax.ShapeDtypeStruct((N, Cout, HW), jnp.bfloat16),
            jax.ShapeDtypeStruct((N * n_t, Cout, 1), jnp.float32),
            jax.ShapeDtypeStruct((N * n_t, Cout, 1), jnp.float32),
        ),
        compiler_params=compiler_params,
        cost_estimate=cost1,
    )(patches, w_mat)

    # ----- Combine tile stats (Chan parallel variance); fold BN + d ---------
    m_t = mean_t.reshape(N * n_t, Cout)
    M2 = m2_t.reshape(N * n_t, Cout)
    mean = jnp.mean(m_t, axis=0)                                     # (Cout,)
    var = (jnp.sum(M2, axis=0)
           + HW_T * jnp.sum(jnp.square(m_t - mean), axis=0)) / (N * HW)
    inv = jax.lax.rsqrt(jnp.maximum(var, 0.0) + 1e-5)
    d = params["d"].astype(jnp.float32)[0]
    gamma = params["bn_w"].astype(jnp.float32)
    beta = params["bn_b"].astype(jnp.float32)
    scale = (gamma * inv * d).reshape(Cout, 1)
    shift = ((beta - gamma * mean * inv) * d).reshape(Cout, 1)

    # ----- Phase 2: scale/shift (+ residual when d == 0) + ReLU, NCHW out ---
    tile_spec = pl.BlockSpec((1, Cout, HW_T), lambda n, t: (n, 0, t))
    vec_spec = pl.BlockSpec((Cout, 1), lambda n, t: (0, 0))
    out_shape2 = jax.ShapeDtypeStruct((N, Cout, HW), jnp.float32)
    cost2 = pl.CostEstimate(
        flops=(4 if d_is_zero else 3) * N * Cout * HW,
        transcendentals=0,
        bytes_accessed=conv_bytes + N * Cout * HW * (8 if d_is_zero else 4),
    )

    if d_is_zero:
        residual = x_nchw if downsample is None else downsample(x_nchw)
        assert residual.shape == (N, Cout, H, W), (
            "d == 0 residual path needs a residual of shape (N, Cout, H, W) "
            "(provide `downsample` or use in_channels == out_channels)")
        res = residual.astype(jnp.float32).reshape(N, Cout, HW)
        out = pl.pallas_call(
            _bn_res_relu_kernel,
            grid=(N, n_t),
            in_specs=[tile_spec, vec_spec, vec_spec, tile_spec],
            out_specs=tile_spec,
            out_shape=out_shape2,
            compiler_params=compiler_params,
            cost_estimate=cost2,
        )(conv, scale, shift, res)
    else:
        out = pl.pallas_call(
            _bn_relu_kernel,
            grid=(N, n_t),
            in_specs=[tile_spec, vec_spec, vec_spec],
            out_specs=tile_spec,
            out_shape=out_shape2,
            compiler_params=compiler_params,
            cost_estimate=cost2,
        )(conv, scale, shift)

    # Free row-major metadata reshape (no transpose pass): (N,Cout,H*W)->NCHW.
    return out.reshape(N, Cout, H, W)


def init_params(key, in_channels, out_channels, cRate=1.0):
    k1, k2 = jax.random.split(key, 2)
    fan_in = in_channels * 3 * 3
    bound = 1.0 / np.sqrt(fan_in)
    return {
        # nn.Conv2d(in, out, 3, padding=1) weight/bias
        "conv_w": jax.random.uniform(k1, (out_channels, in_channels, 3, 3),
                                     jnp.float32, -bound, bound),
        "conv_b": jax.random.uniform(k2, (out_channels,), jnp.float32,
                                     -bound, bound),
        # nn.BatchNorm2d(out) affine params (default init: weight=1, bias=0)
        "bn_w": jnp.ones((out_channels,), jnp.float32),
        "bn_b": jnp.zeros((out_channels,), jnp.float32),
        # self.d = Parameter(torch.Tensor(1).fill_(cRate))
        "d": jnp.full((1,), cRate, jnp.float32),
        # self.d_p is unused in forward but kept for parity
        "d_p": jnp.full((1,), cRate, jnp.float32),
    }


def _reference(x_nchw, params):
    # Pure-JAX reference of the PyTorch forward, with the same bf16 rounding
    # of the conv inputs as the kernel.  Conv bias IS applied here to show
    # that dropping it in the kernel (cancelled by BN mean) is exact.
    xb = x_nchw.astype(jnp.bfloat16).astype(jnp.float32)
    wb = params["conv_w"].astype(jnp.bfloat16).astype(jnp.float32)
    conv = jax.lax.conv_general_dilated(
        xb, wb, window_strides=(1, 1), padding=((1, 1), (1, 1)),
        dimension_numbers=("NCHW", "OIHW", "NCHW"))
    conv = conv + params["conv_b"].reshape(1, -1, 1, 1)
    mean = jnp.mean(conv, axis=(0, 2, 3), keepdims=True)
    var = jnp.mean(jnp.square(conv - mean), axis=(0, 2, 3), keepdims=True)
    xhat = (conv - mean) * jax.lax.rsqrt(var + 1e-5)
    out = (xhat * params["bn_w"].reshape(1, -1, 1, 1)
           + params["bn_b"].reshape(1, -1, 1, 1))
    out = out * params["d"][0]
    if float(np.asarray(jax.device_get(params["d"]))[0]) == 0.0:
        out = out + x_nchw
    return jnp.maximum(out, 0.0)


if __name__ == "__main__":
    key = jax.random.PRNGKey(0)
    kx, kp, kx2, kp2 = jax.random.split(key, 4)

    # --- main path: d = cRate = 1.0 (no residual) ----------------------------
    N, Cin, Cout, Hsp, Wsp = 2, 4, 8, 16, 16
    x = jax.random.normal(kx, (N, Cin, Hsp, Wsp), jnp.float32)
    params = init_params(kp, Cin, Cout, cRate=1.0)

    out = jax.block_until_ready(ds_vgg_block(x, params, downsample=None))
    assert out.shape == (N, Cout, Hsp, Wsp)
    ref = jax.block_until_ready(_reference(x, params))
    np.testing.assert_allclose(np.asarray(out), np.asarray(ref),
                               rtol=2e-2, atol=2e-2)

    # --- d == 0 path: residual add (requires Cin == Cout w/o downsample) -----
    x2 = jax.random.normal(kx2, (N, Cout, Hsp, Wsp), jnp.float32)
    params0 = init_params(kp2, Cout, Cout, cRate=0.0)
    out0 = jax.block_until_ready(ds_vgg_block(x2, params0, downsample=None))
    ref0 = jax.block_until_ready(_reference(x2, params0))
    np.testing.assert_allclose(np.asarray(out0), np.asarray(ref0),
                               rtol=2e-2, atol=2e-2)

    print("KERNEL_OK")
</pallas_src>

<mosaic_0001>
module attributes {stable_mosaic.version = 11 : i64} {
  func.func @_conv_stats_kernel(%arg0: i32, %arg1: i32, %arg2: memref<1x36x256xbf16, #tpu.memory_space<vmem>>, %arg3: memref<8x36xbf16, #tpu.memory_space<vmem>>, %arg4: memref<1x8x256xbf16, #tpu.memory_space<vmem>>, %arg5: memref<1x8x1xf32, #tpu.memory_space<vmem>>, %arg6: memref<1x8x1xf32, #tpu.memory_space<vmem>>) attributes {dimension_semantics = [#tpu.dimension_semantics<parallel>, #tpu.dimension_semantics<parallel>], iteration_bounds = array<i64: 2, 1>, scalar_prefetch = 0 : i64, scratch_operands = 0 : i64, tpu.core_type = #tpu.core_type<tc>, window_params = [{transform_indices = @transform_0, window_bounds = array<i64: 1, 36, 256>}, {pipeline_mode = #tpu.pipeline_mode<synchronous>, transform_indices = @transform_1, window_bounds = array<i64: 8, 36>}, {transform_indices = @transform_2, window_bounds = array<i64: 1, 8, 256>}, {transform_indices = @transform_3, window_bounds = array<i64: 1, 8, 1>}, {transform_indices = @transform_4, window_bounds = array<i64: 1, 8, 1>}]} {
    %c0 = arith.constant 0 : index
    %c0_0 = arith.constant 0 : index
    %0 = vector.load %arg3[%c0, %c0_0] : memref<8x36xbf16, #tpu.memory_space<vmem>>, vector<8x36xbf16>
    %c0_1 = arith.constant 0 : index
    %c0_2 = arith.constant 0 : index
    %c0_3 = arith.constant 0 : index
    %1 = vector.load %arg2[%c0_1, %c0_2, %c0_3] : memref<1x36x256xbf16, #tpu.memory_space<vmem>>, vector<1x36x256xbf16>
    %2 = vector.shape_cast %1 : vector<1x36x256xbf16> to vector<36x256xbf16>
    %cst = arith.constant dense<0.000000e+00> : vector<8x256xf32>
    %3 = tpu.matmul %0, %2, %cst {dimension_numbers = #tpu.dot_dimension_numbers<[1], [0], [0], [1], [0, 0, 1, 1], [], []>} : vector<8x36xbf16>, vector<36x256xbf16>, vector<8x256xf32> -> vector<8x256xf32>
    %cst_4 = arith.constant dense<0.000000e+00> : vector<8xf32>
    %4 = vector.multi_reduction <add>, %3, %cst_4 [1] : vector<8x256xf32> to vector<8xf32>
    %5 = vector.shape_cast %4 : vector<8xf32> to vector<8x1xf32>
    %cst_5 = arith.constant 3.906250e-03 : f32
    %6 = vector.broadcast %cst_5 : f32 to vector<8x1xf32>
    %7 = arith.mulf %5, %6 : vector<8x1xf32>
    %8 = vector.broadcast %7 : vector<8x1xf32> to vector<8x256xf32>
    %9 = arith.subf %3, %8 : vector<8x256xf32>
    %10 = arith.mulf %9, %9 : vector<8x256xf32>
    %cst_6 = arith.constant dense<0.000000e+00> : vector<8xf32>
    %11 = vector.multi_reduction <add>, %10, %cst_6 [1] : vector<8x256xf32> to vector<8xf32>
    %12 = vector.shape_cast %11 : vector<8xf32> to vector<8x1xf32>
    %13 = arith.truncf %3 : vector<8x256xf32> to vector<8x256xbf16>
    %c0_7 = arith.constant 0 : index
    %c0_8 = arith.constant 0 : index
    %c0_9 = arith.constant 0 : index
    %14 = vector.load %arg4[%c0_7, %c0_8, %c0_9] : memref<1x8x256xbf16, #tpu.memory_space<vmem>>, vector<1x8x256xbf16>
    %15 = vector.shape_cast %14 : vector<1x8x256xbf16> to vector<8x256xbf16>
    %16 = vector.shape_cast %13 : vector<8x256xbf16> to vector<1x8x256xbf16>
    tpu.vector_store %arg4[%c0_7, %c0_8, %c0_9], %16 {strides = array<i32>} : memref<1x8x256xbf16, #tpu.memory_space<vmem>>, vector<1x8x256xbf16>,
    %c0_10 = arith.constant 0 : index
    %c0_11 = arith.constant 0 : index
    %c0_12 = arith.constant 0 : index
    %17 = vector.load %arg5[%c0_10, %c0_11, %c0_12] : memref<1x8x1xf32, #tpu.memory_space<vmem>>, vector<1x8x1xf32>
    %18 = vector.shape_cast %17 : vector<1x8x1xf32> to vector<8x1xf32>
    %19 = vector.shape_cast %7 : vector<8x1xf32> to vector<1x8x1xf32>
    tpu.vector_store %arg5[%c0_10, %c0_11, %c0_12], %19 {strides = array<i32>} : memref<1x8x1xf32, #tpu.memory_space<vmem>>, vector<1x8x1xf32>,
    %c0_13 = arith.constant 0 : index
    %c0_14 = arith.constant 0 : index
    %c0_15 = arith.constant 0 : index
    %20 = vector.load %arg6[%c0_13, %c0_14, %c0_15] : memref<1x8x1xf32, #tpu.memory_space<vmem>>, vector<1x8x1xf32>
    %21 = vector.shape_cast %20 : vector<1x8x1xf32> to vector<8x1xf32>
    %22 = vector.shape_cast %12 : vector<8x1xf32> to vector<1x8x1xf32>
    tpu.vector_store %arg6[%c0_13, %c0_14, %c0_15], %22 {strides = array<i32>} : memref<1x8x1xf32, #tpu.memory_space<vmem>>, vector<1x8x1xf32>,
    return
  }
  func.func @transform_0(%arg0: i32, %arg1: i32) -> (i32, i32, i32) {
    %c0_i32 = arith.constant 0 : i32
    %c0_i32_0 = arith.constant 0 : i32
    return %arg0, %c0_i32, %arg1 : i32, i32, i32
  }
  func.func @transform_1(%arg0: i32, %arg1: i32) -> (i32, i32) {
    %c0_i32 = arith.constant 0 : i32
    %c0_i32_0 = arith.constant 0 : i32
    %c0_i32_1 = arith.constant 0 : i32
    return %c0_i32, %c0_i32_0 : i32, i32
  }
  func.func @transform_2(%arg0: i32, %arg1: i32) -> (i32, i32, i32) {
    %c0_i32 = arith.constant 0 : i32
    %c0_i32_0 = arith.constant 0 : i32
    return %arg0, %c0_i32, %arg1 : i32, i32, i32
  }
  func.func @transform_3(%arg0: i32, %arg1: i32) -> (i32, i32, i32) {
    %c1_i32 = arith.constant 1 : i32
    %0 = arith.muli %arg0, %c1_i32 : i32
    %1 = arith.addi %0, %arg1 : i32
    %c0_i32 = arith.constant 0 : i32
    %c0_i32_0 = arith.constant 0 : i32
    %c0_i32_1 = arith.constant 0 : i32
    return %1, %c0_i32, %c0_i32_0 : i32, i32, i32
  }
  func.func @transform_4(%arg0: i32, %arg1: i32) -> (i32, i32, i32) {
    %c1_i32 = arith.constant 1 : i32
    %0 = arith.muli %arg0, %c1_i32 : i32
    %1 = arith.addi %0, %arg1 : i32
    %c0_i32 = arith.constant 0 : i32
    %c0_i32_0 = arith.constant 0 : i32
    %c0_i32_1 = arith.constant 0 : i32
    return %1, %c0_i32, %c0_i32_0 : i32, i32, i32
  }
}

</mosaic_0001>

<llo_original>
// kernel: tpu_custom_call.1
$region0: #{tpu_custom_call.1}
  #allocation0 [shape = 'u32[]', space=smem, size = 0x4, offset = 0x4, fixed_abs, tag = 'smem constant byte address 0x4 - core index']
  #allocation1 [shape = 'u32[72,128]{1,0:T(1,128)}', space=vmem, size = 0x9000, scoped, tag = 'internal scratch']
  %s0 = inlined_call_operand.vmem [shape: bf16[2,36,256], index: 0, kind: input, shape index: {}]
  %s1 = inlined_call_operand.vmem [shape: bf16[8,36], index: 1, kind: input, shape index: {}]
  %s2 = inlined_call_operand.hbm [shape: bf16[2,8,256], index: 2, kind: output, shape index: {0}]
  %s3 = inlined_call_operand.vmem [shape: f32[2,8,1], index: 3, kind: output, shape index: {1}]
  %s4 = inlined_call_operand.vmem [shape: f32[2,8,1], index: 4, kind: output, shape index: {2}]
  %5 = xla_tuple %s2, %s3, %s4
  %s6 = sld [smem:[#allocation0]]
  $region57: #{tpu_custom_call.1} parent=0
    _
  %s8 = ssub.s32 1, %s6
  %s9 = scalar_select 0, %s8, %s6
  $region1: #{tpu_custom_call.1} parent=0
    #allocation2 [shape = 'u8[8192]{0}', space=vmem, size = 0x2000, scoped, tag = 'output window, operand 0']
    #allocation3 [shape = 's32[2]{0}', space=sflag, size = 0x8, scoped, tag = 'scoped memory for tpu_custom_call.1']
    %10 = vsyncpa [#allocation3], 0
    %s11 = scalar_lea.sflag [#allocation3], 1
    %12 = vsyncpa %s11, 0
    loop: start=0, step=1, limit=4
    $region2: #{tpu_custom_call.1} parent=1 // loop_pre_header
      _
    $region3: #{tpu_custom_call.1} parent=1 // loop_header
      %s14 = sphi 0, %s18
      %p15 = scmp.ge.s32.totalorder %s14, 4
      %s21 = sphi 0, %s33
      %s22 = sphi 0, %s29
      %s23 = sphi 0, %s21
      %s24 = sphi 0, %s22
      %s25 = sphi 0, %s23
      %s26 = sphi 0, %s24
      %s38 = sphi 0, %s40
      %s41 = sphi 0, %s38
      %s42 = sphi 0, %s41
      %s58 = sphi 0, %s42
      %s62 = sphi 0, %s62
      %s64 = sphi 0, %s62
      %s65 = sphi 0, %s64
      %s79 = sphi 0, %s65
      %s87 = sphi 0, %s89
      %s90 = sphi 0, %s87
      %s91 = sphi 0, %s90
      %s107 = sphi 0, %s91
      %s115 = sphi 0, %s117
      %s118 = sphi 0, %s115
      %s119 = sphi 0, %s118
      %s135 = sphi 0, %s119
      %s143 = sphi 0, %s145
      %s146 = sphi 0, %s143
      %s147 = sphi 0, %s146
      %s163 = sphi 0, %s147
    $region4: #{tpu_custom_call.1} parent=1 // loop_header_branch
      %17 = sbr.rel (%p15) target = $region8
    $region5: #{tpu_custom_call.1} parent=1 // loop_body
      %s19 = ssub.s32 %s14, 1
      %s20 = ssub.s32 %s14, 2
      %s27 = sadd.s32 1, %s22
      %p28 = scmp.ge.s32.totalorder %s27, 1
      %s29 = scalar_select %p28, 0, %s27
      %s30 = sadd.s32 1, %s21
      %s31 = scalar_select %p28, %s30, %s21
      %p32 = scmp.ge.s32.totalorder %s31, 2
      %s33 = scalar_select %p32, 0, %s31
      %s34 = ssub.s32 %s21, %s33
      %s35 = ssub.s32 %s22, %s29
      %s36 = sor.u32 %s34, %s35
      %p37 = scmp.eq.s32.totalorder %s36, 0
      %s39 = sadd.s32 %s38, 1
      %s40 = scalar_select %p37, %s38, %s39
      %p43 = pneg %p37
      %p44 = scmp.eq.s32.totalorder %s14, 1
      %p45 = por %p43, %p44
      %p46 = scmp.ne.s32.totalorder %s38, %s41
      %p47 = scmp.eq.s32.totalorder %s14, 0
      %p48 = por %p46, %p47
      %p49 = scmp.ne.s32.totalorder %s38, %s41
      %p50 = scmp.eq.s32.totalorder %s19, 1
      %p51 = por %p49, %p50
      %p52 = scmp.ne.s32.totalorder %s41, %s42
      %p53 = scmp.eq.s32.totalorder %s19, 0
      %p54 = por %p52, %p53
      %p55 = scmp.ne.s32.totalorder %s41, %s42
      %p56 = scmp.eq.s32.totalorder %s20, 1
      %p57 = por %p55, %p56
      %p59 = scmp.ne.s32.totalorder %s42, %s58
      %p60 = scmp.eq.s32.totalorder %s20, 0
      %p61 = por %p59, %p60
      %s63 = sadd.s32 %s62, 1
      %p66 = scmp.eq.s32.totalorder %s14, 1
      %p67 = scmp.ne.s32.totalorder %s62, %s64
      %p68 = scmp.eq.s32.totalorder %s14, 0
      %p69 = por %p67, %p68
      %p70 = scmp.ne.s32.totalorder %s62, %s64
      %p71 = scmp.eq.s32.totalorder %s19, 1
      %p72 = por %p70, %p71
      %p73 = scmp.ne.s32.totalorder %s64, %s65
      %p74 = scmp.eq.s32.totalorder %s19, 0
      %p75 = por %p73, %p74
      %p76 = scmp.ne.s32.totalorder %s64, %s65
      %p77 = scmp.eq.s32.totalorder %s20, 1
      %p78 = por %p76, %p77
      %p80 = scmp.ne.s32.totalorder %s65, %s79
      %p81 = scmp.eq.s32.totalorder %s20, 0
      %p82 = por %p80, %p81
      %s83 = ssub.s32 %s21, %s33
      %s84 = ssub.s32 %s22, %s29
      %s85 = sor.u32 %s83, %s84
      %p86 = scmp.eq.s32.totalorder %s85, 0
      %s88 = sadd.s32 %s87, 1
      %s89 = scalar_select %p86, %s87, %s88
      %p92 = pneg %p86
      %p93 = scmp.eq.s32.totalorder %s14, 1
      %p94 = por %p92, %p93
      %p95 = scmp.ne.s32.totalorder %s87, %s90
      %p96 = scmp.eq.s32.totalorder %s14, 0
      %p97 = por %p95, %p96
      %p98 = scmp.ne.s32.totalorder %s87, %s90
      %p99 = scmp.eq.s32.totalorder %s19, 1
      %p100 = por %p98, %p99
      %p101 = scmp.ne.s32.totalorder %s90, %s91
      %p102 = scmp.eq.s32.totalorder %s19, 0
      %p103 = por %p101, %p102
      %p104 = scmp.ne.s32.totalorder %s90, %s91
      %p105 = scmp.eq.s32.totalorder %s20, 1
      %p106 = por %p104, %p105
      %p108 = scmp.ne.s32.totalorder %s91, %s107
      %p109 = scmp.eq.s32.totalorder %s20, 0
      %p110 = por %p108, %p109
      %s111 = sadd.s32 %s21, %s22
      %s112 = sadd.s32 %s33, %s29
      %s113 = ssub.s32 %s111, %s112
      %p114 = scmp.eq.s32.totalorder %s113, 0
      %s116 = sadd.s32 %s115, 1
      %s117 = scalar_select %p114, %s115, %s116
      %p120 = pneg %p114
      %p121 = scmp.eq.s32.totalorder %s14, 1
      %p122 = por %p120, %p121
      %p123 = scmp.ne.s32.totalorder %s115, %s118
      %p124 = scmp.eq.s32.totalorder %s14, 0
      %p125 = por %p123, %p124
      %p126 = scmp.ne.s32.totalorder %s115, %s118
      %p127 = scmp.eq.s32.totalorder %s19, 1
      %p128 = por %p126, %p127
      %p129 = scmp.ne.s32.totalorder %s118, %s119
      %p130 = scmp.eq.s32.totalorder %s19, 0
      %p131 = por %p129, %p130
      %p132 = scmp.ne.s32.totalorder %s118, %s119
      %p133 = scmp.eq.s32.totalorder %s20, 1
      %p134 = por %p132, %p133
      %p136 = scmp.ne.s32.totalorder %s119, %s135
      %p137 = scmp.eq.s32.totalorder %s20, 0
      %p138 = por %p136, %p137
      %s139 = sadd.s32 %s21, %s22
      %s140 = sadd.s32 %s33, %s29
      %s141 = ssub.s32 %s139, %s140
      %p142 = scmp.eq.s32.totalorder %s141, 0
      %s144 = sadd.s32 %s143, 1
      %s145 = scalar_select %p142, %s143, %s144
      %p148 = pneg %p142
      %p149 = scmp.eq.s32.totalorder %s14, 1
      %p150 = por %p148, %p149
      %p151 = scmp.ne.s32.totalorder %s143, %s146
      %p152 = scmp.eq.s32.totalorder %s14, 0
      %p153 = por %p151, %p152
      %p154 = scmp.ne.s32.totalorder %s143, %s146
      %p155 = scmp.eq.s32.totalorder %s19, 1
      %p156 = por %p154, %p155
      %p157 = scmp.ne.s32.totalorder %s146, %s147
      %p158 = scmp.eq.s32.totalorder %s19, 0
      %p159 = por %p157, %p158
      %p160 = scmp.ne.s32.totalorder %s146, %s147
      %p161 = scmp.eq.s32.totalorder %s20, 1
      %p162 = por %p160, %p161
      %p164 = scmp.ne.s32.totalorder %s147, %s163
      %p165 = scmp.eq.s32.totalorder %s20, 0
      %p166 = por %p164, %p165
      %p167 = scmp.le.s32.totalorder 1, %s14
      %p168 = scmp.lt.s32.totalorder %s14, 3
      %p169 = pnand %p167, %p168
      %p170 = pneg %p169
      // Predicated region
      $region9: #{tpu_custom_call.1} parent=5 // pred_check
        _
      $region10: #{tpu_custom_call.1} parent=5 // pred_check_branch
        %172 = sbr.rel (%p169) target = $region12
      $region11: #{tpu_custom_call.1} parent=5 // pred_region
        %s173 = ssub.s32 %s14, 1
        // Predicated region
        $region13: #{tpu_custom_call.1} parent=11 // pred_check
          %p174 = pneg %p75
        $region14: #{tpu_custom_call.1} parent=11 // pred_check_branch
          %176 = sbr.rel (%p174) target = $region16
        $region15: #{tpu_custom_call.1} parent=11 // pred_region
          _
        $region16: #{tpu_custom_call.1} parent=11 // pred_fallthru
          _
      $region12: #{tpu_custom_call.1} parent=5 // pred_fallthru
        _
      %p177 = scmp.lt.s32.totalorder %s14, 2
      // Predicated region
      $region17: #{tpu_custom_call.1} parent=5 // pred_check
        %p178 = pneg %p177
      $region18: #{tpu_custom_call.1} parent=5 // pred_check_branch
        %180 = sbr.rel (%p178) target = $region20
      $region19: #{tpu_custom_call.1} parent=5 // pred_region
        // Predicated region
        $region21: #{tpu_custom_call.1} parent=19 // pred_check
          %p181 = pneg %p48
        $region22: #{tpu_custom_call.1} parent=19 // pred_check_branch
          %183 = sbr.rel (%p181) target = $region24
        $region23: #{tpu_custom_call.1} parent=19 // pred_region
          %s184 = smul.u32 2, %s22
          %p185 = scmp.lt.s32.totalorder %s21, 1
          %s186 = scalar_select %p185, %s21, 1
          %p187 = scmp.lt.s32.totalorder %s184, 1
          %s188 = scalar_select %p187, %s184, 1
          %s189 = smul.addr %s186, 10
          %s190 = sadd.s32 %s188, %s189
          %s191 = smul.addr %s190, 4
          %s192 = scalar_lea.vmem %s0, %s191
          %s193 = smul.u32 2, %s22
        $region24: #{tpu_custom_call.1} parent=19 // pred_fallthru
          _
      $region20: #{tpu_custom_call.1} parent=5 // pred_fallthru
        _
      %p194 = scmp.le.s32.totalorder 1, %s14
      %p195 = scmp.lt.s32.totalorder %s14, 3
      %p196 = pnand %p194, %p195
      %p197 = pneg %p196
      // Predicated region
      $region25: #{tpu_custom_call.1} parent=5 // pred_check
        _
      $region26: #{tpu_custom_call.1} parent=5 // pred_check_branch
        %199 = sbr.rel (%p196) target = $region28
      $region27: #{tpu_custom_call.1} parent=5 // pred_region
        %s200 = ssub.s32 %s14, 1
        %s201 = smul.u32 2, %s24
        %p202 = scmp.lt.s32.totalorder %s23, 1
        %s203 = scalar_select %p202, %s23, 1
        %p204 = scmp.lt.s32.totalorder %s201, 1
        %s205 = scalar_select %p204, %s201, 1
        %s206 = smul.addr %s203, 10
        %s207 = sadd.s32 %s205, %s206
        %s208 = smul.addr %s207, 4
        %s209 = scalar_lea.vmem %s0, %s208
        %p210 = pneg %p54
        %p211 = pneg %p51
        %p212 = pneg %p75
        %p213 = pneg %p72
        %p214 = pneg %p103
        %p215 = pneg %p100
        %s216 = sand.u32 %s90, 1
        %s217 = scalar_lea.sflag [#allocation3], %s216
        %s218 = sand.u32 %s90, 1
        %s219 = smul.addr %s218, 8
        %s220 = scalar_lea.vmem [#allocation2], %s219
        %p221 = pneg %p131
        %p222 = pneg %p128
        %s223 = sadd.s32 %s23, %s24
        %p224 = scmp.lt.s32.totalorder %s223, 1
        %s225 = scalar_select %p224, %s223, 1
        %s226 = smul.addr %s225, 8
        %s227 = scalar_lea.vmem %s3, %s226
        %p228 = pneg %p159
        %p229 = pneg %p156
        %s230 = sadd.s32 %s23, %s24
        %p231 = scmp.lt.s32.totalorder %s230, 1
        %s232 = scalar_select %p231, %s230, 1
        %s233 = smul.addr %s232, 8
        %s234 = scalar_lea.vmem %s4, %s233
        %s235 = smul.u32 2, %s24
        %p236 = scmp.lt.s32.totalorder %s23, 1
        %s237 = scalar_select %p236, %s23, 1
        %p238 = scmp.lt.s32.totalorder %s235, 1
        %s239 = scalar_select %p238, %s235, 1
        %s240 = smul.addr %s237, 10
        %s241 = sadd.s32 %s239, %s240
        %s242 = smul.addr %s241, 4
        %s243 = scalar_lea.vmem %s0, %s242
        %s244 = smul.u32 2, %s24
        %s245 = smul.u32 2, %s24
        %s246 = sadd.s32 %s23, %s24
        %p247 = scmp.lt.s32.totalorder %s246, 1
        %s248 = scalar_select %p247, %s246, 1
        %s249 = smul.addr %s248, 8
        %s250 = scalar_lea.vmem %s3, %s249
        %s251 = sadd.s32 %s23, %s24
        %s252 = sadd.s32 %s23, %s24
        %p253 = scmp.lt.s32.totalorder %s252, 1
        %s254 = scalar_select %p253, %s252, 1
        %s255 = smul.addr %s254, 8
        %s256 = scalar_lea.vmem %s4, %s255
        %s257 = sadd.s32 %s23, %s24
        %v259 = vld [vmem:[%s1] sm:$0xf]
        %v260 = vld [vmem:[%s243] sm:$0xff]
        %v261 = vld [vmem:[%s243 + $0x8] sm:$0xff]
        %v262 = vld [vmem:[%s243 + $0x10] sm:$0xff]
        %v263 = vld [vmem:[%s243 + $0x18] sm:$0xff]
        %v264 = vld [vmem:[%s243 + $0x20] sm:$0x33]
        %v270 = vunpack.c.l.b16 %v260
        %v271 = vunpack.c.h.b16 %v260
        %v272 = vunpack.c.l.b16 %v261
        %v273 = vunpack.c.h.b16 %v261
        %v274 = vunpack.c.l.b16 %v262
        %v275 = vunpack.c.h.b16 %v262
        %v276 = vunpack.c.l.b16 %v263
        %v277 = vunpack.c.h.b16 %v263
        %v278 = vunpack.c.l.b16 %v264
        %v279 = vunpack.c.h.b16 %v264
        %v280 = vpack.c.b16 %v272, %v270
        %v281 = vpack.c.b16 %v273, %v271
        %v282 = vpack.c.b16 %v276, %v274
        %v283 = vpack.c.b16 %v277, %v275
        %v284 = vpack.c.b16 %v278, %v278
        %v285 = vpack.c.b16 %v279, %v279
        %vm290 = vcmask 293888
        %v292 = vsel %vm290, %v259, 0
        %vm294 = vcmask 1041408
        %v296 = vsel %vm294, %v284, 0
        %v299 = vsel %vm294, %v285, 0
        %301 = vmatpush.bf16.msra.mxu0 0
        %302 = vmatpush.bf16.msra.mxu0 0
        %303 = vmatpush.bf16.msra.mxu0 0
        %304 = vmatpush.bf16.msra.mxu0 0
        %305 = vmatpush.bf16.msra.mxu0 0
        %306 = vmatpush.bf16.msra.mxu0 %v296
        %307 = vmatpush.bf16.msra.mxu0 %v282
        %308 = vmatpush.bf16.msra.mxu0 %v280
        %309 = vmatmul.bf16.gmra.mxu0 %v292
        %v310 = vpop.f32.mrf.mxu0
        %v311 = vadd.f32 0.0, %v310
        %v312 = vpop.f32.mrf.mxu0
        %313 = vdwg.mxu0
        %314 = vmatpush.bf16.msra.mxu0 0
        %315 = vmatpush.bf16.msra.mxu0 0
        %316 = vmatpush.bf16.msra.mxu0 0
        %317 = vmatpush.bf16.msra.mxu0 0
        %318 = vmatpush.bf16.msra.mxu0 0
        %319 = vmatpush.bf16.msra.mxu0 %v299
        %320 = vmatpush.bf16.msra.mxu0 %v283
        %321 = vmatpush.bf16.msra.mxu0 %v281
        %322 = vmatmul.bf16.gmra.mxu0 %v292
        %v323 = vpop.f32.mrf.mxu0
        %v324 = vadd.f32 0.0, %v323
        %v325 = vpop.f32.mrf.mxu0
        %326 = vdwg.mxu0
        %v327 = vadd.f32 %v311, %v324
        %328 = vadd.xlane.f32.xlu0 %v327
        %v329 = vpop.xlane.xlu0 %328
        %v330 = vmul.f32 %v329, 0.00390625
        %v331 = vsub.f32 %v311, %v330
        %v332 = vsub.f32 %v324, %v330
        %v333 = vmul.f32 %v331, %v331
        %v334 = vmul.f32 %v332, %v332
        %v335 = vadd.f32 %v333, %v334
        %336 = vadd.xlane.f32.xlu0 %v335
        %v337 = vpop.xlane.xlu0 %336
        %v338 = vpack.c.bf16 %v324, %v311
        %339 = vst [vmem:[%s220] sm:$0xff] %v338
        %vm340 = vcmask 7168
        %341 = vst.msk [vmem:[%s250] sm:$0xff] %vm340, %v330
        %342 = vst.msk [vmem:[%s256] sm:$0xff] %vm340, %v337
        %s343 = sand.u32 %s90, 1
        %s344 = scalar_lea.sflag [#allocation3], %s343
        %s345 = sand.u32 %s90, 1
        %s346 = smul.addr %s345, 8
        %s347 = scalar_lea.vmem [#allocation2], %s346
        %s348 = sadd.s32 %s23, %s24
        %p349 = scmp.lt.s32.totalorder %s348, 1
        %s350 = scalar_select %p349, %s348, 1
        %s351 = smul.addr %s350, 8
        %s352 = scalar_lea.vmem %s3, %s351
        %s353 = sadd.s32 %s23, %s24
        %p354 = scmp.lt.s32.totalorder %s353, 1
        %s355 = scalar_select %p354, %s353, 1
        %s356 = smul.addr %s355, 8
        %s357 = scalar_lea.vmem %s4, %s356
        // Predicated region
        $region29: #{tpu_custom_call.1} parent=27 // pred_check
          %p358 = pneg %p100
        $region30: #{tpu_custom_call.1} parent=27 // pred_check_branch
          %360 = sbr.rel (%p358) target = $region32
        $region31: #{tpu_custom_call.1} parent=27 // pred_region
          %s361 = smul.u32 2, %s24
          %363 = vsyncadd %s344, 0
          %s364 = smul.addr %s23, 2
          %s365 = sadd.s32 %s361, %s364
          %s366 = smul.addr %s365, 4
          %s367 = scalar_lea.hbm %s2, %s366
          %s369 = sshll.u32 %s347, 4
          %s370 = int_to_ptr.vmem [resolvable:$true] %s369
          %s371 = sshll.u32 %s367, 4
          %s372 = int_to_ptr.hbm [resolvable:$true] %s371
          %374 = dma.vmem_to_hbm [thread:$0]  %s370, 128, %s372, %s344
        $region32: #{tpu_custom_call.1} parent=27 // pred_fallthru
          _
        // Predicated region
        $region33: #{tpu_custom_call.1} parent=27 // pred_check
          %p375 = pneg %p128
        $region34: #{tpu_custom_call.1} parent=27 // pred_check_branch
          %377 = sbr.rel (%p375) target = $region36
        $region35: #{tpu_custom_call.1} parent=27 // pred_region
          %s378 = sadd.s32 %s23, %s24
        $region36: #{tpu_custom_call.1} parent=27 // pred_fallthru
          _
        // Predicated region
        $region37: #{tpu_custom_call.1} parent=27 // pred_check
          %p379 = pneg %p156
        $region38: #{tpu_custom_call.1} parent=27 // pred_check_branch
          %381 = sbr.rel (%p379) target = $region40
        $region39: #{tpu_custom_call.1} parent=27 // pred_region
          %s382 = sadd.s32 %s23, %s24
        $region40: #{tpu_custom_call.1} parent=27 // pred_fallthru
          _
      $region28: #{tpu_custom_call.1} parent=5 // pred_fallthru
        _
      %p383 = scmp.le.s32.totalorder 2, %s14
      // Predicated region
      $region41: #{tpu_custom_call.1} parent=5 // pred_check
        %p384 = pneg %p383
      $region42: #{tpu_custom_call.1} parent=5 // pred_check_branch
        %386 = sbr.rel (%p384) target = $region44
      $region43: #{tpu_custom_call.1} parent=5 // pred_region
        %s387 = ssub.s32 %s14, 2
        // Predicated region
        $region45: #{tpu_custom_call.1} parent=43 // pred_check
          %p388 = pneg %p106
        $region46: #{tpu_custom_call.1} parent=43 // pred_check_branch
          %390 = sbr.rel (%p388) target = $region48
        $region47: #{tpu_custom_call.1} parent=43 // pred_region
          %s391 = sand.u32 %s91, 1
          %s392 = scalar_lea.sflag [#allocation3], %s391
          %s393 = sand.u32 %s91, 1
          %s394 = smul.addr %s393, 8
          %s395 = scalar_lea.vmem [#allocation2], %s394
          %397 = dma.done %s392, 128
        $region48: #{tpu_custom_call.1} parent=43 // pred_fallthru
          _
        // Predicated region
        $region49: #{tpu_custom_call.1} parent=43 // pred_check
          %p398 = pneg %p134
        $region50: #{tpu_custom_call.1} parent=43 // pred_check_branch
          %400 = sbr.rel (%p398) target = $region52
        $region51: #{tpu_custom_call.1} parent=43 // pred_region
          %s401 = sadd.s32 %s25, %s26
          %p402 = scmp.lt.s32.totalorder %s401, 1
          %s403 = scalar_select %p402, %s401, 1
          %s404 = smul.addr %s403, 8
          %s405 = scalar_lea.vmem %s3, %s404
        $region52: #{tpu_custom_call.1} parent=43 // pred_fallthru
          _
        // Predicated region
        $region53: #{tpu_custom_call.1} parent=43 // pred_check
          %p406 = pneg %p162
        $region54: #{tpu_custom_call.1} parent=43 // pred_check_branch
          %408 = sbr.rel (%p406) target = $region56
        $region55: #{tpu_custom_call.1} parent=43 // pred_region
          %s409 = sadd.s32 %s25, %s26
          %p410 = scmp.lt.s32.totalorder %s409, 1
          %s411 = scalar_select %p410, %s409, 1
          %s412 = smul.addr %s411, 8
          %s413 = scalar_lea.vmem %s4, %s412
        $region56: #{tpu_custom_call.1} parent=43 // pred_fallthru
          _
      $region44: #{tpu_custom_call.1} parent=5 // pred_fallthru
        _
    $region6: #{tpu_custom_call.1} parent=1 // loop_footer
      %s18 = sadd.s32 1, %s14
    $region7: #{tpu_custom_call.1} parent=1 // loop_footer_branch
      %13 = sbr.rel target = $region3
    $region8: #{tpu_custom_call.1} parent=1 // loop_exit
      _
    %414 = vsyncpa [#allocation3], 1
    %s415 = scalar_lea.sflag [#allocation3], 1
    %416 = vsyncpa %s415, 1

</llo_original>
